<compile_context>
chip_gen: v5e
topology: v5e:2x2
jax: 0.10.0
libtpu: 0.0.40
codegen_flags: <defaults>
</compile_context>

<pallas_src>
import functools

import jax
import jax.numpy as jnp
from jax import lax
from jax.experimental import pallas as pl
from jax.experimental.pallas import tpu as pltpu

EPS = 1e-5
SLOPE = 0.2


def _round_up(x, m):
    return ((x + m - 1) // m) * m


# --------------------------------------------------------------------------
# Per-tile BN statistics: (sum, centered M2 around the tile mean).
# Masking of M-padding rows only runs on the last grid step (pl.when).
# --------------------------------------------------------------------------
def _emit_tile_stats(x, sum_ref, m2_ref, *, tile_m, n_last, masked):
    def unmasked():
        s = jnp.sum(x, axis=0, keepdims=True)                 # (1, C)
        d = x - s * (1.0 / tile_m)
        sum_ref[...] = s[None]                                # (1, 1, C)
        m2_ref[...] = jnp.sum(d * d, axis=0, keepdims=True)[None]

    def last_tile():
        rid = lax.broadcasted_iota(jnp.int32, (x.shape[0], 1), 0)
        valid = rid < n_last
        xm = jnp.where(valid, x, 0.0)
        s = jnp.sum(xm, axis=0, keepdims=True)
        d = jnp.where(valid, x - s * (1.0 / n_last), 0.0)
        sum_ref[...] = s[None]
        m2_ref[...] = jnp.sum(d * d, axis=0, keepdims=True)[None]

    if masked:
        is_last = pl.program_id(0) == pl.num_programs(0) - 1
        pl.when(jnp.logical_not(is_last))(unmasked)
        pl.when(is_last)(last_tile)
    else:
        unmasked()


# --------------------------------------------------------------------------
# Pass 1: h = patches @ w1 + b1   (4x4/s2/p1 conv as matmul), BN1 tile stats.
# --------------------------------------------------------------------------
def _conv1_stats_kernel(p_ref, w1_ref, b1_ref, h_ref, sum_ref, m2_ref,
                        *, tile_m, n_last, masked):
    h = jnp.dot(p_ref[...], w1_ref[...], preferred_element_type=jnp.float32)
    h = h + b1_ref[...]
    h_ref[...] = h                                            # f32 (TM, C)
    _emit_tile_stats(h, sum_ref, m2_ref,
                     tile_m=tile_m, n_last=n_last, masked=masked)


# --------------------------------------------------------------------------
# Pass 2: a = lrelu(BN1(h)); y = a @ w2  (1x1 conv), BN2 tile stats.
# --------------------------------------------------------------------------
def _bn1_conv2_stats_kernel(h_ref, s1_ref, t1_ref, w2_ref,
                            y_ref, sum_ref, m2_ref,
                            *, tile_m, n_last, masked):
    a = h_ref[...] * s1_ref[...] + t1_ref[...]
    a = jnp.where(a > 0, a, SLOPE * a)
    y = jnp.dot(a.astype(jnp.bfloat16), w2_ref[...],
                preferred_element_type=jnp.float32)
    y_ref[...] = y                                            # f32 (TM, C)
    _emit_tile_stats(y, sum_ref, m2_ref,
                     tile_m=tile_m, n_last=n_last, masked=masked)


# --------------------------------------------------------------------------
# Pass 3: out = lrelu(BN2(y))
# --------------------------------------------------------------------------
def _bn2_lrelu_kernel(y_ref, s2_ref, t2_ref, o_ref):
    z = y_ref[...] * s2_ref[...] + t2_ref[...]
    o_ref[...] = jnp.where(z > 0, z, SLOPE * z)


# --------------------------------------------------------------------------
# Wrapper-side glue (plain JAX): im2col, spectral norm, BN stat merging.
# --------------------------------------------------------------------------
def _im2col_4x4_s2_p1(x_nhwc):
    """Extract 4x4 stride-2 pad-1 patches; ordering (kh, kw, c_in)."""
    N, H, W, C = x_nhwc.shape
    Ho, Wo = H // 2, W // 2
    xp = jnp.pad(x_nhwc, ((0, 0), (1, 1), (1, 1), (0, 0)))
    cols = []
    for kh in range(4):
        for kw in range(4):
            cols.append(xp[:, kh:kh + 2 * Ho:2, kw:kw + 2 * Wo:2, :])
    patches = jnp.concatenate(cols, axis=-1)                  # (N, Ho, Wo, 16C)
    return patches.reshape(N * Ho * Wo, 16 * C), (N, Ho, Wo)


def _spectral_normalize(w):
    """Divide weight by its largest singular value (weight viewed as (out,-1)).
    PyTorch estimates sigma with power iteration; exact SVD here (synthetic
    params)."""
    mat = w.reshape(w.shape[0], -1)
    sigma = jnp.linalg.svd(mat, compute_uv=False)[0]
    return w / sigma


def _bn_affine_from_tiles(sum_tiles, m2_tiles, counts, gamma, beta, m_total):
    """Chan parallel-variance merge of per-tile (sum, M2) -> BN (scale, shift)."""
    sums = sum_tiles[:, 0, :]                                 # (G, C)
    m2s = m2_tiles[:, 0, :]                                   # (G, C)
    total = jnp.sum(sums, axis=0)
    gmean = total / m_total
    tile_means = sums / counts[:, None]
    m2 = jnp.sum(m2s, axis=0) + jnp.sum(
        counts[:, None] * (tile_means - gmean) ** 2, axis=0)
    var = jnp.maximum(m2 / m_total, 0.0)                      # biased, global M
    scale = gamma * lax.rsqrt(var + EPS)
    shift = beta - gmean * scale
    return scale.reshape(1, -1), shift.reshape(1, -1)


def down_block_patch_forward(x_nchw, params, *, tile_m=2048):
    """x_nchw: (N, Cin, H, W) float32 -> (N, Cout, H//2, W//2) float32."""
    x = jnp.transpose(x_nchw, (0, 2, 3, 1))                   # NCHW -> NHWC
    patches, (N, Ho, Wo) = _im2col_4x4_s2_p1(x.astype(jnp.bfloat16))
    M, K = patches.shape
    C = params["w1"].shape[0]

    TM = _round_up(min(tile_m, _round_up(M, 8)), 8)
    M_pad = _round_up(M, TM)
    G = M_pad // TM
    masked = (M_pad != M)
    n_last = M - (G - 1) * TM                                  # valid rows, last tile

    # Spectral-normalize conv weights and flatten to matmul layout.
    w1 = _spectral_normalize(params["w1"])                     # (Cout, Cin, 4, 4)
    w2 = _spectral_normalize(params["w2"])                     # (Cout, Cout, 1, 1)
    w1_mat = jnp.transpose(w1, (2, 3, 1, 0)).reshape(K, C)     # (kh,kw,cin)->cout
    w2_mat = w2[:, :, 0, 0].T                                  # (Cin2, Cout2)

    w1_b = w1_mat.astype(jnp.bfloat16)                         # (K, C)
    w2_b = w2_mat.astype(jnp.bfloat16)                         # (C, C)
    patches_p = jnp.pad(patches, ((0, M_pad - M), (0, 0)))     # bf16 (M_pad, K)

    row = lambda v: v.astype(jnp.float32).reshape(1, -1)       # (1, C)
    b1_r = row(params["b1"])
    g1, be1 = params["bn1_gamma"].astype(jnp.float32), params["bn1_beta"].astype(jnp.float32)
    g2, be2 = params["bn2_gamma"].astype(jnp.float32), params["bn2_beta"].astype(jnp.float32)

    tile_spec = lambda cols: pl.BlockSpec((TM, cols), lambda i: (i, 0))
    const_spec = lambda shape: pl.BlockSpec(shape, lambda i: (0,) * len(shape))
    stat_spec = pl.BlockSpec((1, 1, C), lambda i: (i, 0, 0))
    stat_shape = jax.ShapeDtypeStruct((G, 1, C), jnp.float32)
    act_shape = jax.ShapeDtypeStruct((M_pad, C), jnp.float32)
    cp = pltpu.CompilerParams(dimension_semantics=("parallel",),
                              vmem_limit_bytes=32 * 1024 * 1024)
    static = dict(tile_m=TM, n_last=n_last, masked=masked)

    counts = jnp.full((G,), float(TM), jnp.float32)
    if masked:
        counts = counts.at[-1].set(float(n_last))

    # ---- pass 1: conv1 (4x4/s2) + BN1 partial stats -----------------------
    h_raw, sum1, m21 = pl.pallas_call(
        functools.partial(_conv1_stats_kernel, **static),
        out_shape=(act_shape, stat_shape, stat_shape),
        grid=(G,),
        in_specs=[tile_spec(K), const_spec((K, C)), const_spec((1, C))],
        out_specs=(tile_spec(C), stat_spec, stat_spec),
        compiler_params=cp,
    )(patches_p, w1_b, b1_r)

    s1, t1 = _bn_affine_from_tiles(sum1, m21, counts, g1, be1, M)

    # ---- pass 2: BN1 + LeakyReLU + conv2 (1x1) + BN2 partial stats --------
    y_raw, sum2, m22 = pl.pallas_call(
        functools.partial(_bn1_conv2_stats_kernel, **static),
        out_shape=(act_shape, stat_shape, stat_shape),
        grid=(G,),
        in_specs=[tile_spec(C), const_spec((1, C)), const_spec((1, C)),
                  const_spec((C, C))],
        out_specs=(tile_spec(C), stat_spec, stat_spec),
        compiler_params=cp,
    )(h_raw, s1, t1, w2_b)

    s2, t2 = _bn_affine_from_tiles(sum2, m22, counts, g2, be2, M)

    # ---- pass 3: BN2 + LeakyReLU -------------------------------------------
    out_flat = pl.pallas_call(
        _bn2_lrelu_kernel,
        out_shape=act_shape,
        grid=(G,),
        in_specs=[tile_spec(C), const_spec((1, C)), const_spec((1, C))],
        out_specs=tile_spec(C),
        compiler_params=cp,
    )(y_raw, s2, t2)

    out = out_flat[:M].reshape(N, Ho, Wo, C)
    return jnp.transpose(out, (0, 3, 1, 2))                    # NHWC -> NCHW


# --------------------------------------------------------------------------
# Pure-JAX reference (matmul_dtype=bf16 mirrors the kernel's MXU precision;
# matmul_dtype=f32 is the exact PyTorch-style forward).
# --------------------------------------------------------------------------
def _reference_forward(x_nchw, params, *, matmul_dtype=jnp.bfloat16):
    w1 = _spectral_normalize(params["w1"])
    w2 = _spectral_normalize(params["w2"])
    h = lax.conv_general_dilated(
        x_nchw.astype(matmul_dtype), w1.astype(matmul_dtype),
        window_strides=(2, 2), padding=((1, 1), (1, 1)),
        dimension_numbers=("NCHW", "OIHW", "NCHW"),
        preferred_element_type=jnp.float32)
    h = h + params["b1"][None, :, None, None]

    def bn_lrelu(z, g, b):
        m = jnp.mean(z, axis=(0, 2, 3), keepdims=True)
        v = jnp.mean((z - m) ** 2, axis=(0, 2, 3), keepdims=True)
        z = (z - m) * lax.rsqrt(v + EPS) * g[None, :, None, None] \
            + b[None, :, None, None]
        return jnp.where(z > 0, z, SLOPE * z)

    h = bn_lrelu(h, params["bn1_gamma"], params["bn1_beta"])
    y = lax.conv_general_dilated(
        h.astype(matmul_dtype), w2.astype(matmul_dtype),
        window_strides=(1, 1), padding=((0, 0), (0, 0)),
        dimension_numbers=("NCHW", "OIHW", "NCHW"),
        preferred_element_type=jnp.float32)
    return bn_lrelu(y, params["bn2_gamma"], params["bn2_beta"])


def init_params(key, in_planes, out_planes):
    k1, k2, k3 = jax.random.split(key, 3)
    return {
        "w1": 0.1 * jax.random.normal(k1, (out_planes, in_planes, 4, 4),
                                      jnp.float32),
        "b1": 0.1 * jax.random.normal(k2, (out_planes,), jnp.float32),
        "w2": 0.1 * jax.random.normal(k3, (out_planes, out_planes, 1, 1),
                                      jnp.float32),
        "bn1_gamma": jnp.ones((out_planes,), jnp.float32),
        "bn1_beta": jnp.zeros((out_planes,), jnp.float32),
        "bn2_gamma": jnp.ones((out_planes,), jnp.float32),
        "bn2_beta": jnp.zeros((out_planes,), jnp.float32),
    }


if __name__ == "__main__":
    key = jax.random.PRNGKey(0)
    kx, kp = jax.random.split(key)
    N, Cin, H, W = 2, 4, 16, 16
    Cout = 8

    x = jax.random.normal(kx, (N, Cin, H, W), jnp.float32)
    params = init_params(kp, Cin, Cout)

    ref_bf16 = jax.block_until_ready(
        _reference_forward(x, params, matmul_dtype=jnp.bfloat16))
    ref_f32 = jax.block_until_ready(
        _reference_forward(x, params, matmul_dtype=jnp.float32))

    # Default tile (single grid step at this toy size) and a small tile that
    # forces a multi-step grid with M-padding + last-tile row masking.
    for tm in (2048, 48):
        out = jax.block_until_ready(
            down_block_patch_forward(x, params, tile_m=tm))
        assert out.shape == (N, Cout, H // 2, W // 2), out.shape
        err = float(jnp.max(jnp.abs(out - ref_bf16)))
        assert jnp.allclose(out, ref_bf16, atol=2e-3, rtol=2e-3), (tm, err)
        # Loose sanity check against the full-f32 forward (bf16 MXU precision).
        assert float(jnp.max(jnp.abs(out - ref_f32))) < 0.15, tm

    print("KERNEL_OK")
</pallas_src>

<mosaic_0001>
module attributes {stable_mosaic.version = 11 : i64} {
  func.func @_conv1_stats_kernel(%arg0: i32, %arg1: memref<128x64xbf16, #tpu.memory_space<vmem>>, %arg2: memref<64x8xbf16, #tpu.memory_space<vmem>>, %arg3: memref<1x8xf32, #tpu.memory_space<vmem>>, %arg4: memref<128x8xf32, #tpu.memory_space<vmem>>, %arg5: memref<1x1x8xf32, #tpu.memory_space<vmem>>, %arg6: memref<1x1x8xf32, #tpu.memory_space<vmem>>) attributes {dimension_semantics = [#tpu.dimension_semantics<parallel>], iteration_bounds = array<i64: 1>, scalar_prefetch = 0 : i64, scratch_operands = 0 : i64, tpu.core_type = #tpu.core_type<tc>, window_params = [{transform_indices = @transform_0, window_bounds = array<i64: 128, 64>}, {pipeline_mode = #tpu.pipeline_mode<synchronous>, transform_indices = @transform_1, window_bounds = array<i64: 64, 8>}, {pipeline_mode = #tpu.pipeline_mode<synchronous>, transform_indices = @transform_2, window_bounds = array<i64: 1, 8>}, {transform_indices = @transform_3, window_bounds = array<i64: 128, 8>}, {transform_indices = @transform_4, window_bounds = array<i64: 1, 1, 8>}, {transform_indices = @transform_5, window_bounds = array<i64: 1, 1, 8>}]} {
    %c0 = arith.constant 0 : index
    %c0_0 = arith.constant 0 : index
    %0 = vector.load %arg1[%c0, %c0_0] : memref<128x64xbf16, #tpu.memory_space<vmem>>, vector<128x64xbf16>
    %c0_1 = arith.constant 0 : index
    %c0_2 = arith.constant 0 : index
    %1 = vector.load %arg2[%c0_1, %c0_2] : memref<64x8xbf16, #tpu.memory_space<vmem>>, vector<64x8xbf16>
    %cst = arith.constant dense<0.000000e+00> : vector<128x8xf32>
    %2 = tpu.matmul %0, %1, %cst {dimension_numbers = #tpu.dot_dimension_numbers<[1], [0], [0], [1], [0, 0, 1, 1], [], []>} : vector<128x64xbf16>, vector<64x8xbf16>, vector<128x8xf32> -> vector<128x8xf32>
    %c0_3 = arith.constant 0 : index
    %c0_4 = arith.constant 0 : index
    %3 = vector.load %arg3[%c0_3, %c0_4] : memref<1x8xf32, #tpu.memory_space<vmem>>, vector<1x8xf32>
    %4 = vector.broadcast %3 : vector<1x8xf32> to vector<128x8xf32>
    %5 = arith.addf %2, %4 : vector<128x8xf32>
    %c0_5 = arith.constant 0 : index
    %c0_6 = arith.constant 0 : index
    %6 = vector.load %arg4[%c0_5, %c0_6] : memref<128x8xf32, #tpu.memory_space<vmem>>, vector<128x8xf32>
    tpu.vector_store %arg4[%c0_5, %c0_6], %5 {strides = array<i32>} : memref<128x8xf32, #tpu.memory_space<vmem>>, vector<128x8xf32>,
    %cst_7 = arith.constant dense<0.000000e+00> : vector<8xf32>
    %7 = vector.multi_reduction <add>, %5, %cst_7 [0] : vector<128x8xf32> to vector<8xf32>
    %8 = vector.shape_cast %7 : vector<8xf32> to vector<1x8xf32>
    %cst_8 = arith.constant 7.812500e-03 : f32
    %9 = vector.broadcast %cst_8 : f32 to vector<1x8xf32>
    %10 = arith.mulf %8, %9 : vector<1x8xf32>
    %11 = vector.broadcast %10 : vector<1x8xf32> to vector<128x8xf32>
    %12 = arith.subf %5, %11 : vector<128x8xf32>
    %13 = vector.shape_cast %8 : vector<1x8xf32> to vector<1x1x8xf32>
    %c0_9 = arith.constant 0 : index
    %c0_10 = arith.constant 0 : index
    %c0_11 = arith.constant 0 : index
    %14 = vector.load %arg5[%c0_9, %c0_10, %c0_11] : memref<1x1x8xf32, #tpu.memory_space<vmem>>, vector<1x1x8xf32>
    tpu.vector_store %arg5[%c0_9, %c0_10, %c0_11], %13 {strides = array<i32>} : memref<1x1x8xf32, #tpu.memory_space<vmem>>, vector<1x1x8xf32>,
    %15 = arith.mulf %12, %12 : vector<128x8xf32>
    %cst_12 = arith.constant dense<0.000000e+00> : vector<8xf32>
    %16 = vector.multi_reduction <add>, %15, %cst_12 [0] : vector<128x8xf32> to vector<8xf32>
    %17 = vector.shape_cast %16 : vector<8xf32> to vector<1x8xf32>
    %18 = vector.shape_cast %17 : vector<1x8xf32> to vector<1x1x8xf32>
    %c0_13 = arith.constant 0 : index
    %c0_14 = arith.constant 0 : index
    %c0_15 = arith.constant 0 : index
    %19 = vector.load %arg6[%c0_13, %c0_14, %c0_15] : memref<1x1x8xf32, #tpu.memory_space<vmem>>, vector<1x1x8xf32>
    tpu.vector_store %arg6[%c0_13, %c0_14, %c0_15], %18 {strides = array<i32>} : memref<1x1x8xf32, #tpu.memory_space<vmem>>, vector<1x1x8xf32>,
    return
  }
  func.func @transform_0(%arg0: i32) -> (i32, i32) {
    %c0_i32 = arith.constant 0 : i32
    %c0_i32_0 = arith.constant 0 : i32
    return %arg0, %c0_i32 : i32, i32
  }
  func.func @transform_1(%arg0: i32) -> (i32, i32) {
    %c0_i32 = arith.constant 0 : i32
    %c0_i32_0 = arith.constant 0 : i32
    %c0_i32_1 = arith.constant 0 : i32
    return %c0_i32, %c0_i32_0 : i32, i32
  }
  func.func @transform_2(%arg0: i32) -> (i32, i32) {
    %c0_i32 = arith.constant 0 : i32
    %c0_i32_0 = arith.constant 0 : i32
    %c0_i32_1 = arith.constant 0 : i32
    return %c0_i32, %c0_i32_0 : i32, i32
  }
  func.func @transform_3(%arg0: i32) -> (i32, i32) {
    %c0_i32 = arith.constant 0 : i32
    %c0_i32_0 = arith.constant 0 : i32
    return %arg0, %c0_i32 : i32, i32
  }
  func.func @transform_4(%arg0: i32) -> (i32, i32, i32) {
    %c0_i32 = arith.constant 0 : i32
    %c0_i32_0 = arith.constant 0 : i32
    %c0_i32_1 = arith.constant 0 : i32
    return %arg0, %c0_i32, %c0_i32_0 : i32, i32, i32
  }
  func.func @transform_5(%arg0: i32) -> (i32, i32, i32) {
    %c0_i32 = arith.constant 0 : i32
    %c0_i32_0 = arith.constant 0 : i32
    %c0_i32_1 = arith.constant 0 : i32
    return %arg0, %c0_i32, %c0_i32_0 : i32, i32, i32
  }
}

</mosaic_0001>

<llo_original>
// kernel: tpu_custom_call.1
$region0: #{tpu_custom_call.1}
  #allocation0 [shape = 'u32[]', space=smem, size = 0x4, offset = 0x4, fixed_abs, tag = 'smem constant byte address 0x4 - core index']
  #allocation1 [shape = 'u32[72,128]{1,0:T(1,128)}', space=vmem, size = 0x9000, scoped, tag = 'internal scratch']
  %s0 = inlined_call_operand.vmem [shape: bf16[128,64], index: 0, kind: input, shape index: {}]
  %s1 = inlined_call_operand.vmem [shape: bf16[64,8], index: 1, kind: input, shape index: {}]
  %s2 = inlined_call_operand.vmem [shape: f32[1,8], index: 2, kind: input, shape index: {}]
  %s3 = inlined_call_operand.vmem [shape: f32[128,8], index: 3, kind: output, shape index: {0}]
  %s4 = inlined_call_operand.hbm [shape: f32[1,1,8], index: 4, kind: output, shape index: {1}]
  %s5 = inlined_call_operand.hbm [shape: f32[1,1,8], index: 5, kind: output, shape index: {2}]
  %6 = xla_tuple %s3, %s4, %s5
  %s7 = sld [smem:[#allocation0]]
  $region38: #{tpu_custom_call.1} parent=0
    _
  %s9 = ssub.s32 1, %s7
  %s10 = scalar_select 0, %s9, %s7
  $region1: #{tpu_custom_call.1} parent=0
    #allocation2 [shape = 'u8[512]{0}', space=vmem, size = 0x400, scoped, tag = 'output window, operand 1, single buffered']
    #allocation3 [shape = 's32[1]{0}', space=sflag, size = 0x4, scoped, tag = 'scoped memory for tpu_custom_call.1']
    #allocation4 [shape = 'u8[512]{0}', space=vmem, size = 0x400, scoped, tag = 'output window, operand 2, single buffered']
    #allocation5 [shape = 's32[1]{0}', space=sflag, size = 0x4, scoped, tag = 'scoped memory for tpu_custom_call.1']
    %11 = vsyncpa [#allocation3], 0
    %12 = vsyncpa [#allocation5], 0
    // Predicated region
    $region2: #{tpu_custom_call.1} parent=1 // pred_check
      _
    $region3: #{tpu_custom_call.1} parent=1 // pred_check_branch
      %14 = sbr.rel (0) target = $region5
    $region4: #{tpu_custom_call.1} parent=1 // pred_region
      _
    $region5: #{tpu_custom_call.1} parent=1 // pred_fallthru
      _
    // Predicated region
    $region6: #{tpu_custom_call.1} parent=1 // pred_check
      _
    $region7: #{tpu_custom_call.1} parent=1 // pred_check_branch
      %16 = sbr.rel (0) target = $region9
    $region8: #{tpu_custom_call.1} parent=1 // pred_region
      _
    $region9: #{tpu_custom_call.1} parent=1 // pred_fallthru
      _
    // Predicated region
    $region10: #{tpu_custom_call.1} parent=1 // pred_check
      _
    $region11: #{tpu_custom_call.1} parent=1 // pred_check_branch
      %18 = sbr.rel (0) target = $region13
    $region12: #{tpu_custom_call.1} parent=1 // pred_region
      _
    $region13: #{tpu_custom_call.1} parent=1 // pred_fallthru
      _
    %v20 = vld [vmem:[%s0] sm:$0xf]
    %v21 = vld [vmem:[%s0 + $0x4] sm:$0xf]
    %v22 = vld [vmem:[%s0 + $0x8] sm:$0xf]
    %v23 = vld [vmem:[%s0 + $0xc] sm:$0xf]
    %v24 = vld [vmem:[%s0 + $0x10] sm:$0xf]
    %v25 = vld [vmem:[%s0 + $0x14] sm:$0xf]
    %v26 = vld [vmem:[%s0 + $0x18] sm:$0xf]
    %v27 = vld [vmem:[%s0 + $0x1c] sm:$0xf]
    %v28 = vld [vmem:[%s0 + $0x20] sm:$0xf]
    %v29 = vld [vmem:[%s0 + $0x24] sm:$0xf]
    %v30 = vld [vmem:[%s0 + $0x28] sm:$0xf]
    %v31 = vld [vmem:[%s0 + $0x2c] sm:$0xf]
    %v32 = vld [vmem:[%s0 + $0x30] sm:$0xf]
    %v33 = vld [vmem:[%s0 + $0x34] sm:$0xf]
    %v34 = vld [vmem:[%s0 + $0x38] sm:$0xf]
    %v35 = vld [vmem:[%s0 + $0x3c] sm:$0xf]
    %v36 = vld [vmem:[%s1] sm:$0xf]
    %v37 = vld [vmem:[%s1 + $0x4] sm:$0xf]
    %v38 = vld [vmem:[%s1 + $0x8] sm:$0xf]
    %v39 = vld [vmem:[%s1 + $0xc] sm:$0xf]
    %v40 = vld [vmem:[%s1 + $0x10] sm:$0xf]
    %v41 = vld [vmem:[%s1 + $0x14] sm:$0xf]
    %v42 = vld [vmem:[%s1 + $0x18] sm:$0xf]
    %v43 = vld [vmem:[%s1 + $0x1c] sm:$0xf]
    %v44 = vld [vmem:[%s2] sm:$0x1]
    %v46 = vperm.slane %v44, 0
    %v64 = vunpack.c.l.b16 %v20
    %v65 = vunpack.c.l.b16 %v21
    %v66 = vunpack.c.l.b16 %v22
    %v67 = vunpack.c.l.b16 %v23
    %v68 = vunpack.c.l.b16 %v24
    %v69 = vunpack.c.l.b16 %v25
    %v70 = vunpack.c.l.b16 %v26
    %v71 = vunpack.c.l.b16 %v27
    %v72 = vunpack.c.l.b16 %v28
    %v73 = vunpack.c.l.b16 %v29
    %v74 = vunpack.c.l.b16 %v30
    %v75 = vunpack.c.l.b16 %v31
    %v76 = vunpack.c.l.b16 %v32
    %v77 = vunpack.c.l.b16 %v33
    %v78 = vunpack.c.l.b16 %v34
    %v79 = vunpack.c.l.b16 %v35
    %v80 = vpack.c.b16 %v65, %v64
    %v81 = vpack.c.b16 %v67, %v66
    %v82 = vpack.c.b16 %v69, %v68
    %v83 = vpack.c.b16 %v71, %v70
    %v84 = vpack.c.b16 %v73, %v72
    %v85 = vpack.c.b16 %v75, %v74
    %v86 = vpack.c.b16 %v77, %v76
    %v87 = vpack.c.b16 %v79, %v78
    %v96 = vunpack.c.l.b16 %v36
    %v97 = vunpack.c.l.b16 %v37
    %v98 = vunpack.c.l.b16 %v38
    %v99 = vunpack.c.l.b16 %v39
    %v100 = vunpack.c.l.b16 %v40
    %v101 = vunpack.c.l.b16 %v41
    %v102 = vunpack.c.l.b16 %v42
    %v103 = vunpack.c.l.b16 %v43
    %v104 = vpack.c.b16 %v97, %v96
    %v105 = vpack.c.b16 %v99, %v98
    %v106 = vpack.c.b16 %v101, %v100
    %v107 = vpack.c.b16 %v103, %v102
    %vm112 = vcmask 523264
    %v114 = vsel %vm112, %v80, 0
    %v117 = vsel %vm112, %v81, 0
    %v120 = vsel %vm112, %v82, 0
    %v123 = vsel %vm112, %v83, 0
    %v126 = vsel %vm112, %v84, 0
    %v129 = vsel %vm112, %v85, 0
    %v132 = vsel %vm112, %v86, 0
    %v135 = vsel %vm112, %v87, 0
    %137 = vmatpush.bf16.msra.mxu0 0
    %138 = vmatpush.bf16.msra.mxu0 0
    %139 = vmatpush.bf16.msra.mxu0 0
    %140 = vmatpush.bf16.msra.mxu0 0
    %141 = vmatpush.bf16.msra.mxu0 %v107
    %142 = vmatpush.bf16.msra.mxu0 %v106
    %143 = vmatpush.bf16.msra.mxu0 %v105
    %144 = vmatpush.bf16.msra.mxu0 %v104
    %145 = vmatmul.bf16.gmra.mxu0 %v114
    %v146 = vpop.f32.mrf.mxu0
    %v147 = vadd.f32 %v46, %v146
    %v148 = vpop.f32.mrf.mxu0
    %v149 = vadd.f32 %v46, %v148
    %150 = vmatmul.bf16.gmra.mxu0 %v117
    %v151 = vpop.f32.mrf.mxu0
    %v152 = vadd.f32 %v46, %v151
    %v153 = vpop.f32.mrf.mxu0
    %v154 = vadd.f32 %v46, %v153
    %155 = vmatmul.bf16.gmra.mxu0 %v120
    %v156 = vpop.f32.mrf.mxu0
    %v157 = vadd.f32 %v46, %v156
    %v158 = vpop.f32.mrf.mxu0
    %v159 = vadd.f32 %v46, %v158
    %160 = vmatmul.bf16.gmra.mxu0 %v123
    %v161 = vpop.f32.mrf.mxu0
    %v162 = vadd.f32 %v46, %v161
    %v163 = vpop.f32.mrf.mxu0
    %v164 = vadd.f32 %v46, %v163
    %165 = vmatmul.bf16.gmra.mxu0 %v126
    %v166 = vpop.f32.mrf.mxu0
    %v167 = vadd.f32 %v46, %v166
    %v168 = vpop.f32.mrf.mxu0
    %v169 = vadd.f32 %v46, %v168
    %170 = vmatmul.bf16.gmra.mxu0 %v129
    %v171 = vpop.f32.mrf.mxu0
    %v172 = vadd.f32 %v46, %v171
    %v173 = vpop.f32.mrf.mxu0
    %v174 = vadd.f32 %v46, %v173
    %175 = vmatmul.bf16.gmra.mxu0 %v132
    %v176 = vpop.f32.mrf.mxu0
    %v177 = vadd.f32 %v46, %v176
    %v178 = vpop.f32.mrf.mxu0
    %v179 = vadd.f32 %v46, %v178
    %180 = vmatmul.bf16.gmra.mxu0 %v135
    %v181 = vpop.f32.mrf.mxu0
    %v182 = vadd.f32 %v46, %v181
    %v183 = vpop.f32.mrf.mxu0
    %v184 = vadd.f32 %v46, %v183
    %185 = vdwg.mxu0
    %vm186 = vcmask 64512
    %187 = vst.msk [vmem:[%s3] sm:$0xff] %vm186, %v147
    %188 = vst.msk [vmem:[%s3 + $0x8] sm:$0xff] %vm186, %v149
    %189 = vst.msk [vmem:[%s3 + $0x10] sm:$0xff] %vm186, %v152
    %190 = vst.msk [vmem:[%s3 + $0x18] sm:$0xff] %vm186, %v154
    %191 = vst.msk [vmem:[%s3 + $0x20] sm:$0xff] %vm186, %v157
    %192 = vst.msk [vmem:[%s3 + $0x28] sm:$0xff] %vm186, %v159
    %193 = vst.msk [vmem:[%s3 + $0x30] sm:$0xff] %vm186, %v162
    %194 = vst.msk [vmem:[%s3 + $0x38] sm:$0xff] %vm186, %v164
    %195 = vst.msk [vmem:[%s3 + $0x40] sm:$0xff] %vm186, %v167
    %196 = vst.msk [vmem:[%s3 + $0x48] sm:$0xff] %vm186, %v169
    %197 = vst.msk [vmem:[%s3 + $0x50] sm:$0xff] %vm186, %v172
    %198 = vst.msk [vmem:[%s3 + $0x58] sm:$0xff] %vm186, %v174
    %199 = vst.msk [vmem:[%s3 + $0x60] sm:$0xff] %vm186, %v177
    %200 = vst.msk [vmem:[%s3 + $0x68] sm:$0xff] %vm186, %v179
    %201 = vst.msk [vmem:[%s3 + $0x70] sm:$0xff] %vm186, %v182
    %202 = vst.msk [vmem:[%s3 + $0x78] sm:$0xff] %vm186, %v184
    %v203 = vsel %vm186, %v147, 0.0
    %v204 = vsel %vm186, %v149, 0.0
    %v205 = vadd.f32 %v203, %v204
    %v206 = vsel %vm186, %v152, 0.0
    %v207 = vadd.f32 %v205, %v206
    %v208 = vsel %vm186, %v154, 0.0
    %v209 = vadd.f32 %v207, %v208
    %v210 = vsel %vm186, %v157, 0.0
    %v211 = vadd.f32 %v209, %v210
    %v212 = vsel %vm186, %v159, 0.0
    %v213 = vadd.f32 %v211, %v212
    %v214 = vsel %vm186, %v162, 0.0
    %v215 = vadd.f32 %v213, %v214
    %v216 = vsel %vm186, %v164, 0.0
    %v217 = vadd.f32 %v215, %v216
    %v218 = vsel %vm186, %v167, 0.0
    %v219 = vadd.f32 %v217, %v218
    %v220 = vsel %vm186, %v169, 0.0
    %v221 = vadd.f32 %v219, %v220
    %v222 = vsel %vm186, %v172, 0.0
    %v223 = vadd.f32 %v221, %v222
    %v224 = vsel %vm186, %v174, 0.0
    %v225 = vadd.f32 %v223, %v224
    %v226 = vsel %vm186, %v177, 0.0
    %v227 = vadd.f32 %v225, %v226
    %v228 = vsel %vm186, %v179, 0.0
    %v229 = vadd.f32 %v227, %v228
    %v230 = vsel %vm186, %v182, 0.0
    %v231 = vadd.f32 %v229, %v230
    %v232 = vsel %vm186, %v184, 0.0
    %v233 = vadd.f32 %v231, %v232
    %v234 = vrot.slane %v233, 4
    %v235 = vadd.f32 %v233, %v234
    %v236 = vrot.slane %v235, 2
    %v237 = vadd.f32 %v235, %v236
    %v238 = vrot.slane %v237, 1
    %v239 = vadd.f32 %v237, %v238
    %v240 = vmul.f32 %v239, 0.0078125
    %v241 = vsub.f32 %v147, %v240
    %v242 = vsub.f32 %v149, %v240
    %v243 = vsub.f32 %v152, %v240
    %v244 = vsub.f32 %v154, %v240
    %v245 = vsub.f32 %v157, %v240
    %v246 = vsub.f32 %v159, %v240
    %v247 = vsub.f32 %v162, %v240
    %v248 = vsub.f32 %v164, %v240
    %v249 = vsub.f32 %v167, %v240
    %v250 = vsub.f32 %v169, %v240
    %v251 = vsub.f32 %v172, %v240
    %v252 = vsub.f32 %v174, %v240
    %v253 = vsub.f32 %v177, %v240
    %v254 = vsub.f32 %v179, %v240
    %v255 = vsub.f32 %v182, %v240
    %v256 = vsub.f32 %v184, %v240
    %vm257 = vcmask 57344
    %258 = vst.msk [vmem:[#allocation2] sm:$0x1] %vm257, %v239
    %v259 = vmul.f32 %v241, %v241
    %v260 = vmul.f32 %v242, %v242
    %v261 = vmul.f32 %v243, %v243
    %v262 = vmul.f32 %v244, %v244
    %v263 = vmul.f32 %v245, %v245
    %v264 = vmul.f32 %v246, %v246
    %v265 = vmul.f32 %v247, %v247
    %v266 = vmul.f32 %v248, %v248
    %v267 = vmul.f32 %v249, %v249
    %v268 = vmul.f32 %v250, %v250
    %v269 = vmul.f32 %v251, %v251
    %v270 = vmul.f32 %v252, %v252
    %v271 = vmul.f32 %v253, %v253
    %v272 = vmul.f32 %v254, %v254
    %v273 = vmul.f32 %v255, %v255
    %v274 = vmul.f32 %v256, %v256
    %v275 = vsel %vm186, %v259, 0.0
    %v276 = vsel %vm186, %v260, 0.0
    %v277 = vadd.f32 %v275, %v276
    %v278 = vsel %vm186, %v261, 0.0
    %v279 = vadd.f32 %v277, %v278
    %v280 = vsel %vm186, %v262, 0.0
    %v281 = vadd.f32 %v279, %v280
    %v282 = vsel %vm186, %v263, 0.0
    %v283 = vadd.f32 %v281, %v282
    %v284 = vsel %vm186, %v264, 0.0
    %v285 = vadd.f32 %v283, %v284
    %v286 = vsel %vm186, %v265, 0.0
    %v287 = vadd.f32 %v285, %v286
    %v288 = vsel %vm186, %v266, 0.0
    %v289 = vadd.f32 %v287, %v288
    %v290 = vsel %vm186, %v267, 0.0
    %v291 = vadd.f32 %v289, %v290
    %v292 = vsel %vm186, %v268, 0.0
    %v293 = vadd.f32 %v291, %v292
    %v294 = vsel %vm186, %v269, 0.0
    %v295 = vadd.f32 %v293, %v294
    %v296 = vsel %vm186, %v270, 0.0
    %v297 = vadd.f32 %v295, %v296
    %v298 = vsel %vm186, %v271, 0.0
    %v299 = vadd.f32 %v297, %v298
    %v300 = vsel %vm186, %v272, 0.0
    %v301 = vadd.f32 %v299, %v300
    %v302 = vsel %vm186, %v273, 0.0
    %v303 = vadd.f32 %v301, %v302
    %v304 = vsel %vm186, %v274, 0.0
    %v305 = vadd.f32 %v303, %v304
    %v306 = vrot.slane %v305, 4
    %v307 = vadd.f32 %v305, %v306
    %v308 = vrot.slane %v307, 2
    %v309 = vadd.f32 %v307, %v308
    %v310 = vrot.slane %v309, 1
    %v311 = vadd.f32 %v309, %v310
    %312 = vst.msk [vmem:[#allocation4] sm:$0x1] %vm257, %v311
    // Predicated region
    $region14: #{tpu_custom_call.1} parent=1 // pred_check
      _
    $region15: #{tpu_custom_call.1} parent=1 // pred_check_branch
      %314 = sbr.rel (0) target = $region17
    $region16: #{tpu_custom_call.1} parent=1 // pred_region
      _
    $region17: #{tpu_custom_call.1} parent=1 // pred_fallthru
      _
    // Predicated region
    $region18: #{tpu_custom_call.1} parent=1 // pred_check
      _
    $region19: #{tpu_custom_call.1} parent=1 // pred_check_branch
      %316 = sbr.rel (0) target = $region21
    $region20: #{tpu_custom_call.1} parent=1 // pred_region
      %318 = vsyncadd [#allocation3], 0
      %s320 = sshll.u32 [#allocation2], 4
      %s321 = int_to_ptr.vmem [resolvable:$true] %s320
      %s322 = sshll.u32 %s4, 4
      %s323 = int_to_ptr.hbm [resolvable:$true] %s322
      %325 = dma.vmem_to_hbm [thread:$0]  %s321, 16, %s323, [#allocation3]
    $region21: #{tpu_custom_call.1} parent=1 // pred_fallthru
      _
    // Predicated region
    $region22: #{tpu_custom_call.1} parent=1 // pred_check
      _
    $region23: #{tpu_custom_call.1} parent=1 // pred_check_branch
      %327 = sbr.rel (0) target = $region25
    $region24: #{tpu_custom_call.1} parent=1 // pred_region
      %329 = vsyncadd [#allocation5], 0
      %s331 = sshll.u32 [#allocation4], 4
      %s332 = int_to_ptr.vmem [resolvable:$true] %s331
      %s333 = sshll.u32 %s5, 4
      %s334 = int_to_ptr.hbm [resolvable:$true] %s333
      %336 = dma.vmem_to_hbm [thread:$0]  %s332, 16, %s334, [#allocation5]
    $region25: #{tpu_custom_call.1} parent=1 // pred_fallthru
      _
    // Predicated region
    $region26: #{tpu_custom_call.1} parent=1 // pred_check
      _
    $region27: #{tpu_custom_call.1} parent=1 // pred_check_branch
      %338 = sbr.rel (0) target = $region29
    $region28: #{tpu_custom_call.1} parent=1 // pred_region
      _
    $region29: #{tpu_custom_call.1} parent=1 // pred_fallthru
      _
    // Predicated region
    $region30: #{tpu_custom_call.1} parent=1 // pred_check
      _
    $region31: #{tpu_custom_call.1} parent=1 // pred_check_branch
      %340 = sbr.rel (0) target = $region33
    $region32: #{tpu_custom_call.1} parent=1 // pred_region
      %342 = dma.done [#allocation3], 16
    $region33: #{tpu_custom_call.1} parent=1 // pred_fallthru
      _
    // Predicated region
    $region34: #{tpu_custom_call.1} parent=1 // pred_check
      _
    $region35: #{tpu_custom_call.1} parent=1 // pred_check_branch
      %344 = sbr.rel (0) target = $region37
    $region36: #{tpu_custom_call.1} parent=1 // pred_region
      %346 = dma.done [#allocation5], 16
    $region37: #{tpu_custom_call.1} parent=1 // pred_fallthru
      _
    %347 = vsyncpa [#allocation3], 1
    %348 = vsyncpa [#allocation5], 1

</llo_original>
